<compile_context>
chip_gen: v5e
topology: v5e:2x2
jax: 0.10.0
libtpu: 0.0.40
codegen_flags: <defaults>
</compile_context>

<pallas_src>
import functools

import jax
import jax.numpy as jnp
from jax.experimental import pallas as pl
from jax.experimental.pallas import tpu as pltpu


# ---------------------------------------------------------------------------
# helpers
# ---------------------------------------------------------------------------

def _round_up(v, m):
    return (v + m - 1) // m * m


def _cdiv(a, b):
    return -(-a // b)


def _use_mxu_reduce(t):
    """Use an MXU dot (vs XLU jnp.sum) for the lane reduction of a (C, t) tile.

    Only worth it when the reduction is long enough to matter and the (t, 1)
    ones operand (lane-padded to t*128*4 bytes of VMEM) stays small.  Targets
    v7x where the kernel is compute-(XLU-)bound; on v5e/v6e it is hidden behind
    HBM anyway.
    """
    return t >= 1024 and t * 128 * 4 <= (4 << 20)


def _vmem_limit(nbytes):
    # Explicit scoped-VMEM request: enough for our blocks (+ headroom), capped
    # conservatively below v7x's 64 MiB physical VMEM.
    return int(min(48 << 20, max(nbytes, 16 << 20)))


def _partial_sums(x32, use_mxu):
    """Per-channel spatial sum and sum-of-squares of a (C, T) f32 tile."""
    if use_mxu:
        # Offload the two cross-lane reductions to the otherwise-idle MXU.
        # HIGHEST precision keeps full f32 accuracy for the f32 operands.
        ones = jnp.ones((x32.shape[1], 1), jnp.float32)
        s = jnp.dot(x32, ones, precision=jax.lax.Precision.HIGHEST,
                    preferred_element_type=jnp.float32)
        sq = jnp.dot(x32 * x32, ones, precision=jax.lax.Precision.HIGHEST,
                     preferred_element_type=jnp.float32)
    else:
        s = jnp.sum(x32, axis=1, keepdims=True)
        sq = jnp.sum(x32 * x32, axis=1, keepdims=True)
    return s, sq


def _mean_plus_std(s, sq, hw_true):
    """mean + population std per channel, from spatial sum / sum-of-squares."""
    inv_hw = 1.0 / hw_true
    mean = s * inv_hw
    var = jnp.maximum(sq * inv_hw - mean * mean, 0.0)   # clamp f32 round-off
    return mean + jnp.sqrt(var)


def _channel_conv_sigmoid(w_ref, y):
    """Conv1d(1,1,k=3,pad=1,bias=False) along the channel axis + sigmoid.

    y: (C, 1) f32.  Padded (zeroed) channels carry y == 0, so the true channel
    boundary sees exactly the zero padding of the PyTorch Conv1d.
    """
    zero = jnp.zeros((1, 1), dtype=y.dtype)
    y_prev = jnp.concatenate([zero, y[:-1]], axis=0)     # y[c-1]
    y_next = jnp.concatenate([y[1:], zero], axis=0)      # y[c+1]
    conv = w_ref[0] * y_prev + w_ref[1] * y + w_ref[2] * y_next
    return jax.nn.sigmoid(conv)


# ---------------------------------------------------------------------------
# kernels
# ---------------------------------------------------------------------------

def _eca_fused_kernel(w_ref, x_ref, o_ref, *, hw_true, use_mxu):
    # w_ref: SMEM (3,) f32 conv taps; x_ref / o_ref: VMEM blocks (1, C, HWp).
    x32 = x_ref[0].astype(jnp.float32)                   # (C, HWp)
    s, sq = _partial_sums(x32, use_mxu)                  # (C, 1) each
    scale = _channel_conv_sigmoid(w_ref, _mean_plus_std(s, sq, hw_true))
    o_ref[0] = (x32 * scale).astype(o_ref.dtype)         # broadcast over HW


def _eca_stats_kernel(x_ref, sum_ref, sumsq_ref, *, use_mxu):
    # Tiled path, pass 1: accumulate per-channel sum / sumsq over HW tiles.
    @pl.when(pl.program_id(1) == 0)
    def _init():
        sum_ref[...] = jnp.zeros_like(sum_ref)
        sumsq_ref[...] = jnp.zeros_like(sumsq_ref)

    x32 = x_ref[0].astype(jnp.float32)                   # (C, THW)
    s, sq = _partial_sums(x32, use_mxu)
    sum_ref[0] += s
    sumsq_ref[0] += sq


def _eca_scale_kernel(w_ref, sum_ref, sumsq_ref, x_ref, o_ref, *, hw_true):
    # Tiled path, pass 2: the (C,1) conv + sigmoid is tiny, so recomputing it
    # per HW tile is cheaper than another pass / host round trip.
    y = _mean_plus_std(sum_ref[0], sumsq_ref[0], hw_true)
    scale = _channel_conv_sigmoid(w_ref, y)
    x32 = x_ref[0].astype(jnp.float32)
    o_ref[0] = (x32 * scale).astype(o_ref.dtype)


# ---------------------------------------------------------------------------
# wrapper
# ---------------------------------------------------------------------------

def eca_layer_pallas(x, conv_weight, *, donate_input=False,
                     force_tiled=False, tile_hw=None):
    """ECA forward.  x: (B, C, H, W); conv_weight: 3 Conv1d(1,1,3) taps.

    x may be bf16 to halve HBM traffic (compute is f32 in-kernel, output is
    written in x.dtype).  donate_input=True aliases the (padded) input slab to
    the output.  force_tiled / tile_hw are testing & tuning knobs.
    """
    b, c, h, w = x.shape
    hw = h * w
    itemsize = jnp.dtype(x.dtype).itemsize

    conv_weight = jnp.asarray(conv_weight, jnp.float32).reshape(-1)
    if conv_weight.shape[0] != 3:
        raise ValueError("eca_layer_pallas supports k_size=3 (module default)")

    c_pad = max(8, _round_up(c, 8))          # sublane-dense channel axis
    x3 = x.reshape(b, c, hw)

    # ---- fused single-slab path: whole (C, HW) slab per grid step ----------
    hw_pad_f = _round_up(hw, 128)            # lane-dense spatial axis
    use_mxu_f = _use_mxu_reduce(hw_pad_f)
    ones_f = hw_pad_f * 128 * 4 if use_mxu_f else 0
    fused_vmem = (4 * c_pad * hw_pad_f * itemsize     # x in + out, double-buffered
                  + 2 * c_pad * hw_pad_f * 4          # f32 upcast + x*x temporaries
                  + ones_f + (2 << 20))
    use_fused = (not force_tiled) and fused_vmem <= (44 << 20)

    if use_fused:
        hw_pad = hw_pad_f
        if (c_pad, hw_pad) != (c, hw):
            x3 = jnp.pad(x3, ((0, 0), (0, c_pad - c), (0, hw_pad - hw)))
        kernel = functools.partial(_eca_fused_kernel,
                                   hw_true=float(hw), use_mxu=use_mxu_f)
        out3 = pl.pallas_call(
            kernel,
            out_shape=jax.ShapeDtypeStruct((b, c_pad, hw_pad), x.dtype),
            grid=(b,),
            in_specs=[
                pl.BlockSpec(memory_space=pltpu.SMEM),                  # conv taps
                pl.BlockSpec((1, c_pad, hw_pad), lambda i: (i, 0, 0)),  # x slab
            ],
            out_specs=pl.BlockSpec((1, c_pad, hw_pad), lambda i: (i, 0, 0)),
            compiler_params=pltpu.CompilerParams(
                dimension_semantics=("parallel",),
                vmem_limit_bytes=_vmem_limit(fused_vmem)),
            input_output_aliases={1: 0} if donate_input else {},
        )(conv_weight, x3)
    else:
        # ---- tiled two-pass fallback (large C*HW): bounds VMEM and gives a
        #      second parallel grid axis (pass 2) for v7x's two TensorCores.
        thw_target = tile_hw if tile_hw is not None else max(
            128, ((3 << 20) // (c_pad * itemsize)) // 128 * 128)
        n_t = max(1, _cdiv(hw, thw_target))
        thw = _round_up(_cdiv(hw, n_t), 128)
        hw_pad = thw * n_t
        use_mxu_t = _use_mxu_reduce(thw)
        ones_t = thw * 128 * 4 if use_mxu_t else 0
        tiled_vmem = (4 * c_pad * thw * itemsize + 2 * c_pad * thw * 4
                      + ones_t + (2 << 20))
        vmem_limit = _vmem_limit(tiled_vmem)

        if (c_pad, hw_pad) != (c, hw):
            x3 = jnp.pad(x3, ((0, 0), (0, c_pad - c), (0, hw_pad - hw)))

        # Pass 1: per-channel spatial sum / sumsq accumulated across HW tiles.
        sums, sumsqs = pl.pallas_call(
            functools.partial(_eca_stats_kernel, use_mxu=use_mxu_t),
            out_shape=(jax.ShapeDtypeStruct((b, c_pad, 1), jnp.float32),
                       jax.ShapeDtypeStruct((b, c_pad, 1), jnp.float32)),
            grid=(b, n_t),
            in_specs=[pl.BlockSpec((1, c_pad, thw), lambda i, t: (i, 0, t))],
            out_specs=[pl.BlockSpec((1, c_pad, 1), lambda i, t: (i, 0, 0)),
                       pl.BlockSpec((1, c_pad, 1), lambda i, t: (i, 0, 0))],
            compiler_params=pltpu.CompilerParams(
                dimension_semantics=("parallel", "arbitrary"),
                vmem_limit_bytes=vmem_limit),
        )(x3)

        # Pass 2: conv + sigmoid (tiny) and per-tile scaling of x.
        out3 = pl.pallas_call(
            functools.partial(_eca_scale_kernel, hw_true=float(hw)),
            out_shape=jax.ShapeDtypeStruct((b, c_pad, hw_pad), x.dtype),
            grid=(b, n_t),
            in_specs=[
                pl.BlockSpec(memory_space=pltpu.SMEM),                   # conv taps
                pl.BlockSpec((1, c_pad, 1), lambda i, t: (i, 0, 0)),     # sums
                pl.BlockSpec((1, c_pad, 1), lambda i, t: (i, 0, 0)),     # sumsqs
                pl.BlockSpec((1, c_pad, thw), lambda i, t: (i, 0, t)),   # x tile
            ],
            out_specs=pl.BlockSpec((1, c_pad, thw), lambda i, t: (i, 0, t)),
            compiler_params=pltpu.CompilerParams(
                dimension_semantics=("parallel", "parallel"),
                vmem_limit_bytes=vmem_limit),
            input_output_aliases={3: 0} if donate_input else {},
        )(conv_weight, sums, sumsqs, x3)

    if (c_pad, hw_pad) != (c, hw):
        out3 = out3[:, :c, :hw]
    return out3.reshape(b, c, h, w)


# ---------------------------------------------------------------------------
# reference + test
# ---------------------------------------------------------------------------

def eca_layer_ref(x, conv_weight):
    """Pure-JAX reference mirroring the PyTorch forward."""
    conv_weight = jnp.asarray(conv_weight, jnp.float32).reshape(-1)
    mean = jnp.mean(x, axis=(2, 3), keepdims=True)
    std = jnp.sqrt(jnp.mean((x - mean) ** 2, axis=(2, 3), keepdims=True))
    y = (mean + std)[:, :, 0, 0]                        # (B, C)
    ypad = jnp.pad(y, ((0, 0), (1, 1)))
    conv = (conv_weight[0] * ypad[:, :-2]
            + conv_weight[1] * ypad[:, 1:-1]
            + conv_weight[2] * ypad[:, 2:])
    s = jax.nn.sigmoid(conv)[:, :, None, None]
    return x * s


if __name__ == "__main__":
    key = jax.random.PRNGKey(0)
    kx, kw = jax.random.split(key)

    B, C, H, W = 2, 4, 16, 16
    x = jax.random.normal(kx, (B, C, H, W), dtype=jnp.float32)
    # Conv1d(1, 1, kernel_size=3, bias=False) weight, flattened from (1, 1, 3).
    conv_weight = jax.random.normal(kw, (3,), dtype=jnp.float32) * 0.5

    ref = eca_layer_ref(x, conv_weight)

    # Primary (fused single-slab) path.
    out = jax.block_until_ready(eca_layer_pallas(x, conv_weight))
    assert out.shape == x.shape
    assert jnp.allclose(out, ref, atol=1e-5, rtol=1e-5), "fused path mismatch"

    # Tiled two-pass fallback (forced, 2 HW tiles) — the large-C*HW / v7x path.
    out_t = jax.block_until_ready(
        eca_layer_pallas(x, conv_weight, force_tiled=True, tile_hw=128))
    assert jnp.allclose(out_t, ref, atol=1e-5, rtol=1e-5), "tiled path mismatch"

    print("KERNEL_OK")
</pallas_src>

<mosaic_0001>
module attributes {stable_mosaic.version = 11 : i64} {
  func.func @_eca_fused_kernel(%arg0: i32, %arg1: memref<3xf32, #tpu.memory_space<smem>>, %arg2: memref<1x8x256xf32, #tpu.memory_space<vmem>>, %arg3: memref<1x8x256xf32, #tpu.memory_space<vmem>>) attributes {dimension_semantics = [#tpu.dimension_semantics<parallel>], iteration_bounds = array<i64: 2>, scalar_prefetch = 0 : i64, scratch_operands = 0 : i64, tpu.core_type = #tpu.core_type<tc>, window_params = [{transform_indices = @transform_0, window_bounds = array<i64: 3>}, {transform_indices = @transform_1, window_bounds = array<i64: 1, 8, 256>}, {transform_indices = @transform_2, window_bounds = array<i64: 1, 8, 256>}]} {
    %c0 = arith.constant 0 : index
    %c0_0 = arith.constant 0 : index
    %c0_1 = arith.constant 0 : index
    %0 = vector.load %arg2[%c0, %c0_0, %c0_1] : memref<1x8x256xf32, #tpu.memory_space<vmem>>, vector<1x8x256xf32>
    %1 = vector.shape_cast %0 : vector<1x8x256xf32> to vector<8x256xf32>
    %cst = arith.constant dense<0.000000e+00> : vector<8xf32>
    %2 = vector.multi_reduction <add>, %1, %cst [1] : vector<8x256xf32> to vector<8xf32>
    %3 = vector.shape_cast %2 : vector<8xf32> to vector<8x1xf32>
    %4 = arith.mulf %1, %1 : vector<8x256xf32>
    %cst_2 = arith.constant dense<0.000000e+00> : vector<8xf32>
    %5 = vector.multi_reduction <add>, %4, %cst_2 [1] : vector<8x256xf32> to vector<8xf32>
    %6 = vector.shape_cast %5 : vector<8xf32> to vector<8x1xf32>
    %cst_3 = arith.constant 3.906250e-03 : f32
    %7 = vector.broadcast %cst_3 : f32 to vector<8x1xf32>
    %8 = arith.mulf %3, %7 : vector<8x1xf32>
    %cst_4 = arith.constant 3.906250e-03 : f32
    %9 = vector.broadcast %cst_4 : f32 to vector<8x1xf32>
    %10 = arith.mulf %6, %9 : vector<8x1xf32>
    %11 = arith.mulf %8, %8 : vector<8x1xf32>
    %12 = arith.subf %10, %11 : vector<8x1xf32>
    %cst_5 = arith.constant 0.000000e+00 : f32
    %13 = vector.broadcast %cst_5 : f32 to vector<8x1xf32>
    %14 = arith.maximumf %12, %13 : vector<8x1xf32>
    %15 = math.sqrt %14 : vector<8x1xf32>
    %16 = arith.addf %8, %15 : vector<8x1xf32>
    %cst_6 = arith.constant 0.000000e+00 : f32
    %17 = vector.broadcast %cst_6 : f32 to vector<1x1xf32>
    %18 = vector.extract_strided_slice %16 {offsets = [0, 0], sizes = [7, 1], strides = [1, 1]} : vector<8x1xf32> to vector<7x1xf32>
    %19 = tpu.concatenate %17, %18 in 0 : vector<1x1xf32>, vector<7x1xf32> -> vector<8x1xf32>
    %20 = vector.extract_strided_slice %16 {offsets = [1, 0], sizes = [7, 1], strides = [1, 1]} : vector<8x1xf32> to vector<7x1xf32>
    %21 = tpu.concatenate %20, %17 in 0 : vector<7x1xf32>, vector<1x1xf32> -> vector<8x1xf32>
    %c0_7 = arith.constant 0 : index
    %22 = memref.load %arg1[%c0_7] : memref<3xf32, #tpu.memory_space<smem>>
    %23 = vector.broadcast %22 : f32 to vector<8x1xf32>
    %24 = arith.mulf %23, %19 : vector<8x1xf32>
    %c1 = arith.constant 1 : index
    %25 = memref.load %arg1[%c1] : memref<3xf32, #tpu.memory_space<smem>>
    %26 = vector.broadcast %25 : f32 to vector<8x1xf32>
    %27 = arith.mulf %26, %16 : vector<8x1xf32>
    %28 = arith.addf %24, %27 : vector<8x1xf32>
    %c2 = arith.constant 2 : index
    %29 = memref.load %arg1[%c2] : memref<3xf32, #tpu.memory_space<smem>>
    %30 = vector.broadcast %29 : f32 to vector<8x1xf32>
    %31 = arith.mulf %30, %21 : vector<8x1xf32>
    %32 = arith.addf %28, %31 : vector<8x1xf32>
    %33 = arith.negf %32 : vector<8x1xf32>
    %34 = math.exp %33 : vector<8x1xf32>
    %cst_8 = arith.constant 1.000000e+00 : f32
    %35 = vector.broadcast %cst_8 : f32 to vector<8x1xf32>
    %36 = arith.addf %35, %34 : vector<8x1xf32>
    %37 = arith.divf %35, %36 : vector<8x1xf32>
    %38 = vector.broadcast %37 : vector<8x1xf32> to vector<8x256xf32>
    %39 = arith.mulf %1, %38 : vector<8x256xf32>
    %c0_9 = arith.constant 0 : index
    %c0_10 = arith.constant 0 : index
    %c0_11 = arith.constant 0 : index
    %40 = vector.load %arg3[%c0_9, %c0_10, %c0_11] : memref<1x8x256xf32, #tpu.memory_space<vmem>>, vector<1x8x256xf32>
    %41 = vector.shape_cast %40 : vector<1x8x256xf32> to vector<8x256xf32>
    %42 = vector.shape_cast %39 : vector<8x256xf32> to vector<1x8x256xf32>
    tpu.vector_store %arg3[%c0_9, %c0_10, %c0_11], %42 {strides = array<i32>} : memref<1x8x256xf32, #tpu.memory_space<vmem>>, vector<1x8x256xf32>,
    return
  }
  func.func @transform_0(%arg0: i32) -> i32 {
    %c0_i32 = arith.constant 0 : i32
    %c0_i32_0 = arith.constant 0 : i32
    return %c0_i32 : i32
  }
  func.func @transform_1(%arg0: i32) -> (i32, i32, i32) {
    %c0_i32 = arith.constant 0 : i32
    %c0_i32_0 = arith.constant 0 : i32
    %c0_i32_1 = arith.constant 0 : i32
    return %arg0, %c0_i32, %c0_i32_0 : i32, i32, i32
  }
  func.func @transform_2(%arg0: i32) -> (i32, i32, i32) {
    %c0_i32 = arith.constant 0 : i32
    %c0_i32_0 = arith.constant 0 : i32
    %c0_i32_1 = arith.constant 0 : i32
    return %arg0, %c0_i32, %c0_i32_0 : i32, i32, i32
  }
}

</mosaic_0001>

<llo_original>
// kernel: tpu_custom_call.1
$region0: #{tpu_custom_call.1}
  #allocation0 [shape = 'u32[]', space=smem, size = 0x4, offset = 0x4, fixed_abs, tag = 'smem constant byte address 0x4 - core index']
  #allocation1 [shape = 'u32[72,128]{1,0:T(1,128)}', space=vmem, size = 0x9000, scoped, tag = 'internal scratch']
  %s0 = inlined_call_operand.hbm [shape: f32[3], index: 0, kind: input, shape index: {}]
  %s1 = inlined_call_operand.hbm [shape: f32[2,8,256], index: 1, kind: input, shape index: {}]
  %s2 = inlined_call_operand.hbm [shape: f32[2,8,256], index: 2, kind: output, shape index: {}]
  %s3 = sld [smem:[#allocation0]]
  $region49: #{tpu_custom_call.1} parent=0
    _
  %s5 = ssub.s32 1, %s3
  %s6 = scalar_select 0, %s5, %s3
  $region1: #{tpu_custom_call.1} parent=0
    #allocation2 [shape = 'u8[512]{0}', space=smem, size = 0x200, scoped, tag = 'input window, operand 0, single buffered']
    #allocation3 [shape = 's32[2]{0}', space=sflag, size = 0x8, scoped, tag = 'scoped memory for tpu_custom_call.1']
    #allocation4 [shape = 's32[2]{0}', space=sflag, size = 0x8, scoped, tag = 'scoped memory for tpu_custom_call.1']
    #allocation5 [shape = 's32[2]{0}', space=sflag, size = 0x8, scoped, tag = 'scoped memory for tpu_custom_call.1']
    #allocation6 [shape = 'u8[16384]{0}', space=vmem, size = 0x4000, scoped, tag = 'input window, operand 1']
    #allocation7 [shape = 'u8[16384]{0}', space=vmem, size = 0x4000, scoped, tag = 'output window, operand 0']
    %7 = vsyncpa [#allocation5], 0
    %8 = vsyncpa [#allocation3], 0
    %s9 = scalar_lea.sflag [#allocation3], 1
    %10 = vsyncpa %s9, 0
    %11 = vsyncpa [#allocation4], 0
    %s12 = scalar_lea.sflag [#allocation4], 1
    %13 = vsyncpa %s12, 0
    loop: start=0, step=1, limit=4
    $region2: #{tpu_custom_call.1} parent=1 // loop_pre_header
      _
    $region3: #{tpu_custom_call.1} parent=1 // loop_header
      %s15 = sphi 0, %s19
      %p16 = scmp.ge.s32.totalorder %s15, 4
      %s23 = sphi 0, %s23
      %s25 = sphi 0, %s23
      %s26 = sphi 0, %s25
      %s40 = sphi 0, %s26
      %s46 = sphi 0, %s48
      %s49 = sphi 0, %s46
      %s50 = sphi 0, %s49
      %s66 = sphi 0, %s50
      %s72 = sphi 0, %s74
      %s75 = sphi 0, %s72
      %s76 = sphi 0, %s75
      %s92 = sphi 0, %s76
    $region4: #{tpu_custom_call.1} parent=1 // loop_header_branch
      %18 = sbr.rel (%p16) target = $region8
    $region5: #{tpu_custom_call.1} parent=1 // loop_body
      %s20 = ssub.s32 %s15, 1
      %s21 = ssub.s32 %s15, 2
      %s22 = sadd.s32 %s15, 1
      %s24 = sadd.s32 %s23, 1
      %p27 = scmp.eq.s32.totalorder %s15, 1
      %p28 = scmp.ne.s32.totalorder %s23, %s25
      %p29 = scmp.eq.s32.totalorder %s15, 0
      %p30 = por %p28, %p29
      %p31 = scmp.ne.s32.totalorder %s23, %s25
      %p32 = scmp.eq.s32.totalorder %s20, 1
      %p33 = por %p31, %p32
      %p34 = scmp.ne.s32.totalorder %s25, %s26
      %p35 = scmp.eq.s32.totalorder %s20, 0
      %p36 = por %p34, %p35
      %p37 = scmp.ne.s32.totalorder %s25, %s26
      %p38 = scmp.eq.s32.totalorder %s21, 1
      %p39 = por %p37, %p38
      %p41 = scmp.ne.s32.totalorder %s26, %s40
      %p42 = scmp.eq.s32.totalorder %s21, 0
      %p43 = por %p41, %p42
      %s44 = ssub.s32 %s15, %s22
      %p45 = scmp.eq.s32.totalorder %s44, 0
      %s47 = sadd.s32 %s46, 1
      %s48 = scalar_select %p45, %s46, %s47
      %p51 = pneg %p45
      %p52 = scmp.eq.s32.totalorder %s15, 1
      %p53 = por %p51, %p52
      %p54 = scmp.ne.s32.totalorder %s46, %s49
      %p55 = scmp.eq.s32.totalorder %s15, 0
      %p56 = por %p54, %p55
      %p57 = scmp.ne.s32.totalorder %s46, %s49
      %p58 = scmp.eq.s32.totalorder %s20, 1
      %p59 = por %p57, %p58
      %p60 = scmp.ne.s32.totalorder %s49, %s50
      %p61 = scmp.eq.s32.totalorder %s20, 0
      %p62 = por %p60, %p61
      %p63 = scmp.ne.s32.totalorder %s49, %s50
      %p64 = scmp.eq.s32.totalorder %s21, 1
      %p65 = por %p63, %p64
      %p67 = scmp.ne.s32.totalorder %s50, %s66
      %p68 = scmp.eq.s32.totalorder %s21, 0
      %p69 = por %p67, %p68
      %s70 = ssub.s32 %s15, %s22
      %p71 = scmp.eq.s32.totalorder %s70, 0
      %s73 = sadd.s32 %s72, 1
      %s74 = scalar_select %p71, %s72, %s73
      %p77 = pneg %p71
      %p78 = scmp.eq.s32.totalorder %s15, 1
      %p79 = por %p77, %p78
      %p80 = scmp.ne.s32.totalorder %s72, %s75
      %p81 = scmp.eq.s32.totalorder %s15, 0
      %p82 = por %p80, %p81
      %p83 = scmp.ne.s32.totalorder %s72, %s75
      %p84 = scmp.eq.s32.totalorder %s20, 1
      %p85 = por %p83, %p84
      %p86 = scmp.ne.s32.totalorder %s75, %s76
      %p87 = scmp.eq.s32.totalorder %s20, 0
      %p88 = por %p86, %p87
      %p89 = scmp.ne.s32.totalorder %s75, %s76
      %p90 = scmp.eq.s32.totalorder %s21, 1
      %p91 = por %p89, %p90
      %p93 = scmp.ne.s32.totalorder %s76, %s92
      %p94 = scmp.eq.s32.totalorder %s21, 0
      %p95 = por %p93, %p94
      %p96 = scmp.le.s32.totalorder 1, %s15
      %p97 = scmp.lt.s32.totalorder %s15, 3
      %p98 = pnand %p96, %p97
      %p99 = pneg %p98
      // Predicated region
      $region9: #{tpu_custom_call.1} parent=5 // pred_check
        _
      $region10: #{tpu_custom_call.1} parent=5 // pred_check_branch
        %101 = sbr.rel (%p98) target = $region12
      $region11: #{tpu_custom_call.1} parent=5 // pred_region
        %s102 = ssub.s32 %s15, 1
        // Predicated region
        $region13: #{tpu_custom_call.1} parent=11 // pred_check
          %p103 = pneg %p36
        $region14: #{tpu_custom_call.1} parent=11 // pred_check_branch
          %105 = sbr.rel (%p103) target = $region16
        $region15: #{tpu_custom_call.1} parent=11 // pred_region
          %107 = vsyncadd [#allocation5], 0
          %s109 = sshll.u32 %s0, 4
          %s110 = int_to_ptr.hbm [resolvable:$true] %s109
          %112 = dma.hbm_to_smem %s110, 16, [#allocation2], [#allocation5]
        $region16: #{tpu_custom_call.1} parent=11 // pred_fallthru
          _
      $region12: #{tpu_custom_call.1} parent=5 // pred_fallthru
        _
      %p113 = scmp.lt.s32.totalorder %s15, 2
      // Predicated region
      $region17: #{tpu_custom_call.1} parent=5 // pred_check
        %p114 = pneg %p113
      $region18: #{tpu_custom_call.1} parent=5 // pred_check_branch
        %116 = sbr.rel (%p114) target = $region20
      $region19: #{tpu_custom_call.1} parent=5 // pred_region
        // Predicated region
        $region21: #{tpu_custom_call.1} parent=19 // pred_check
          %p117 = pneg %p56
        $region22: #{tpu_custom_call.1} parent=19 // pred_check_branch
          %119 = sbr.rel (%p117) target = $region24
        $region23: #{tpu_custom_call.1} parent=19 // pred_region
          %s120 = sand.u32 %s46, 1
          %s121 = scalar_lea.sflag [#allocation3], %s120
          %s122 = sand.u32 %s46, 1
          %s123 = smul.addr %s122, 16
          %s124 = scalar_lea.vmem [#allocation6], %s123
          %126 = vsyncadd %s121, 0
          %s127 = smul.addr %s15, 2
          %s128 = smul.addr %s127, 8
          %s129 = scalar_lea.hbm %s1, %s128
          %s131 = sshll.u32 %s129, 4
          %s132 = int_to_ptr.hbm [resolvable:$true] %s131
          %s133 = sshll.u32 %s124, 4
          %s134 = int_to_ptr.vmem [resolvable:$true] %s133
          %136 = dma.hbm_to_vmem [thread:$0]  %s132, 256, %s134, %s121
        $region24: #{tpu_custom_call.1} parent=19 // pred_fallthru
          _
      $region20: #{tpu_custom_call.1} parent=5 // pred_fallthru
        _
      %p137 = scmp.le.s32.totalorder 1, %s15
      %p138 = scmp.lt.s32.totalorder %s15, 3
      %p139 = pnand %p137, %p138
      %p140 = pneg %p139
      // Predicated region
      $region25: #{tpu_custom_call.1} parent=5 // pred_check
        _
      $region26: #{tpu_custom_call.1} parent=5 // pred_check_branch
        %142 = sbr.rel (%p139) target = $region28
      $region27: #{tpu_custom_call.1} parent=5 // pred_region
        %s143 = ssub.s32 %s15, 1
        // Predicated region
        $region29: #{tpu_custom_call.1} parent=27 // pred_check
          %p144 = pneg %p36
        $region30: #{tpu_custom_call.1} parent=27 // pred_check_branch
          %146 = sbr.rel (%p144) target = $region32
        $region31: #{tpu_custom_call.1} parent=27 // pred_region
          %148 = dma.done [#allocation5], 16
        $region32: #{tpu_custom_call.1} parent=27 // pred_fallthru
          _
        %s149 = sand.u32 %s49, 1
        %s150 = scalar_lea.sflag [#allocation3], %s149
        %s151 = sand.u32 %s49, 1
        %s152 = smul.addr %s151, 16
        %s153 = scalar_lea.vmem [#allocation6], %s152
        // Predicated region
        $region33: #{tpu_custom_call.1} parent=27 // pred_check
          %p154 = pneg %p62
        $region34: #{tpu_custom_call.1} parent=27 // pred_check_branch
          %156 = sbr.rel (%p154) target = $region36
        $region35: #{tpu_custom_call.1} parent=27 // pred_region
          %158 = dma.done %s150, 256
        $region36: #{tpu_custom_call.1} parent=27 // pred_fallthru
          _
        %159 = sfence
        %p160 = pneg %p36
        %p161 = pneg %p33
        %s162 = sand.u32 %s49, 1
        %s163 = scalar_lea.sflag [#allocation3], %s162
        %s164 = sand.u32 %s49, 1
        %s165 = smul.addr %s164, 16
        %s166 = scalar_lea.vmem [#allocation6], %s165
        %p167 = pneg %p62
        %p168 = pneg %p59
        %p169 = pneg %p88
        %p170 = pneg %p85
        %s171 = sand.u32 %s75, 1
        %s172 = scalar_lea.sflag [#allocation4], %s171
        %s173 = sand.u32 %s75, 1
        %s174 = smul.addr %s173, 16
        %s175 = scalar_lea.vmem [#allocation7], %s174
        %v176 = vld [vmem:[%s153] sm:$0xff]
        %v177 = vld [vmem:[%s153 + $0x8] sm:$0xff]
        %v178 = vadd.f32 %v176, %v177
        %179 = vadd.xlane.f32.xlu0 %v178
        %v180 = vpop.xlane.xlu0 %179
        %v181 = vmul.f32 %v176, %v176
        %v182 = vmul.f32 %v177, %v177
        %v183 = vadd.f32 %v181, %v182
        %184 = vadd.xlane.f32.xlu0 %v183
        %v185 = vpop.xlane.xlu0 %184
        %v186 = vmul.f32 %v180, 0.00390625
        %v187 = vmul.f32 %v185, 0.00390625
        %v188 = vmul.f32 %v186, %v186
        %v189 = vsub.f32 %v187, %v188
        %v190 = vmax.f32 %v189, 0.0
        %v191 = vrsqrt.pop %v190
        %v192 = vmul.f32 %v191, %v190
        %v193 = vmul.f32 %v192, %v191
        %v194 = vmul.f32 0.5, %v193
        %v195 = vsub.f32 1.5, %v194
        %v196 = vmul.f32 %v191, %v195
        %v197 = vmul.f32 %v190, %v196
        %vm198 = vcmp.eq.f32.partialorder %v190, inf
        %v199 = vsel %vm198, %v190, %v197
        %vm200 = vcmp.eq.f32.partialorder %v190, 0.0
        %v201 = vand.u32 %v190, 2147483648
        %v202 = vsel %vm200, %v201, %v199
        %v203 = vadd.f32 %v186, %v202
        %v205 = vrot.slane %v203, 7
        %vm207 = vcmask 1040384
        %v208 = vsel %vm207, 0.0, %v205
        %v209 = vrot.slane %v203, 1
        %vm211 = vcmask 1046528
        %v212 = vsel %vm211, %v209, 0.0
        %s213 = sld [smem:[#allocation2]]
        %v214 = vstv %s213
        %v215 = vmul.f32 %v214, %v208
        %s216 = sld [smem:[#allocation2 + $0x1]]
        %v217 = vstv %s216
        %v218 = vmul.f32 %v217, %v203
        %v219 = vadd.f32 %v215, %v218
        %s220 = sld [smem:[#allocation2 + $0x2]]
        %v221 = vstv %s220
        %v222 = vmul.f32 %v221, %v212
        %v223 = vadd.f32 %v219, %v222
        %v224 = vxor.u32 %v223, 2147483648
        %v225 = vmul.f32 %v224, 1.442695
        %v226 = vpow.pop %v225
        %v227 = vadd.f32 %v226, 1.0
        %v228 = vrcp.pop %v227
        %v229 = vmul.f32 %v227, %v228
        %v230 = vsub.f32 1.0, %v229
        %v231 = vmul.f32 %v228, %v230
        %v232 = vadd.f32 %v228, %v231
        %vm233 = vweird.f32 %v227
        %vm234 = vweird.f32 %v228
        %vm235 = vmor %vm233, %vm234
        %v236 = vsel %vm235, %v228, %v232
        %v237 = vand.u32 2147483647, %v227
        %vm238 = vcmp.eq.f32.partialorder %v237, 8.507059e+37
        %v239 = vand.u32 %v227, 2147483648
        %v240 = vor.u32 1.1754944e-38, %v239
        %v241 = vsel %vm238, %v240, %v236
        %v242 = vmul.f32 1.0, %v241
        %244 = vset.pattern.permute.xlu0 0
        %245 = vperm.xlu0 %244, %v242
        %v246 = vpop.permute.xlu0 %245
        %v248 = vmul.f32 %v176, %v246
        %v249 = vmul.f32 %v177, %v246
        %250 = vst [vmem:[%s175] sm:$0xff] %v248
        %251 = vst [vmem:[%s175 + $0x8] sm:$0xff] %v249
        %s252 = sand.u32 %s75, 1
        %s253 = scalar_lea.sflag [#allocation4], %s252
        %s254 = sand.u32 %s75, 1
        %s255 = smul.addr %s254, 16
        %s256 = scalar_lea.vmem [#allocation7], %s255
        // Predicated region
        $region37: #{tpu_custom_call.1} parent=27 // pred_check
          %p257 = pneg %p85
        $region38: #{tpu_custom_call.1} parent=27 // pred_check_branch
          %259 = sbr.rel (%p257) target = $region40
        $region39: #{tpu_custom_call.1} parent=27 // pred_region
          %261 = vsyncadd %s253, 0
          %s262 = smul.addr %s20, 2
          %s263 = smul.addr %s262, 8
          %s264 = scalar_lea.hbm %s2, %s263
          %s266 = sshll.u32 %s256, 4
          %s267 = int_to_ptr.vmem [resolvable:$true] %s266
          %s268 = sshll.u32 %s264, 4
          %s269 = int_to_ptr.hbm [resolvable:$true] %s268
          %271 = dma.vmem_to_hbm [thread:$0]  %s267, 256, %s269, %s253
        $region40: #{tpu_custom_call.1} parent=27 // pred_fallthru
          _
      $region28: #{tpu_custom_call.1} parent=5 // pred_fallthru
        _
      %p272 = scmp.le.s32.totalorder 2, %s15
      // Predicated region
      $region41: #{tpu_custom_call.1} parent=5 // pred_check
        %p273 = pneg %p272
      $region42: #{tpu_custom_call.1} parent=5 // pred_check_branch
        %275 = sbr.rel (%p273) target = $region44
      $region43: #{tpu_custom_call.1} parent=5 // pred_region
        %s276 = ssub.s32 %s15, 2
        // Predicated region
        $region45: #{tpu_custom_call.1} parent=43 // pred_check
          %p277 = pneg %p91
        $region46: #{tpu_custom_call.1} parent=43 // pred_check_branch
          %279 = sbr.rel (%p277) target = $region48
        $region47: #{tpu_custom_call.1} parent=43 // pred_region
          %s280 = sand.u32 %s76, 1
          %s281 = scalar_lea.sflag [#allocation4], %s280
          %s282 = sand.u32 %s76, 1
          %s283 = smul.addr %s282, 16
          %s284 = scalar_lea.vmem [#allocation7], %s283
          %286 = dma.done %s281, 256
        $region48: #{tpu_custom_call.1} parent=43 // pred_fallthru
          _
      $region44: #{tpu_custom_call.1} parent=5 // pred_fallthru
        _
    $region6: #{tpu_custom_call.1} parent=1 // loop_footer
      %s19 = sadd.s32 1, %s15
    $region7: #{tpu_custom_call.1} parent=1 // loop_footer_branch
      %14 = sbr.rel target = $region3
    $region8: #{tpu_custom_call.1} parent=1 // loop_exit
      _
    %287 = vsyncpa [#allocation3], 1
    %s288 = scalar_lea.sflag [#allocation3], 1
    %289 = vsyncpa %s288, 1
    %290 = vsyncpa [#allocation4], 1
    %s291 = scalar_lea.sflag [#allocation4], 1
    %292 = vsyncpa %s291, 1
    %293 = vsyncpa [#allocation5], 1
    %s294 = scalar_lea.sflag [#allocation5], 1
    %295 = vsyncpa %s294, 1

</llo_original>
